<compile_context>
chip_gen: v7x
topology: tpu7x:2x2x1
jax: 0.10.0
libtpu: 0.0.40
codegen_flags: <defaults>
</compile_context>

<pallas_src>
import jax
import jax.numpy as jnp
from jax.experimental import pallas as pl
from jax.experimental.pallas import tpu as pltpu


_LANE = 128
_SUBLANE = 8


def _round_up(x, m):
    return ((x + m - 1) // m) * m


# ----------------------------------------------------------------------------
# Pallas kernel: tiled (N parallel, K reduction) matmul + bias   out = x @ w + b
# ----------------------------------------------------------------------------
def _linear_kernel(x_ref, w_ref, b_ref, o_ref, acc_ref):
    k = pl.program_id(1)

    @pl.when(k == 0)
    def _():
        acc_ref[...] = jnp.zeros_like(acc_ref)

    # bf16 x bf16 -> fp32 accumulation on the MXU.
    acc_ref[...] += jnp.dot(
        x_ref[...], w_ref[...], preferred_element_type=jnp.float32
    )

    @pl.when(k == pl.num_programs(1) - 1)
    def _():
        o_ref[...] = (acc_ref[...] + b_ref[...]).astype(o_ref.dtype)


def linear_pallas(x, w, b, *, compute_dtype=jnp.bfloat16,
                  max_weight_tile_bytes=12 * 1024 * 1024):
    """Dense layer  y = x @ w + b  (bf16 compute, fp32 accumulate).

    Pads B up to a sublane multiple (8), N up to a lane multiple (128) with zero
    weight/bias columns (sliced off afterwards), and only tiles the contraction K
    if the weight tile would not fit the per-step VMEM budget.
    """
    B, K = x.shape
    Kw, N = w.shape
    assert K == Kw, (K, Kw)

    Bp = _round_up(B, _SUBLANE)          # sublane-dense rows
    Np = _round_up(N, _LANE)             # lane-dense output (no masked vst)

    # N tiling: gives a 'parallel' grid axis (2 TCs on v7x); single tile when small.
    tn = 256 if (Np > 256 and Np % 256 == 0) else Np

    itemsize = jnp.dtype(compute_dtype).itemsize
    # K tiling: single grid step if the weight tile fits the VMEM budget,
    # otherwise the fewest 512-multiple K-tiles that do.
    if K * tn * itemsize <= max_weight_tile_bytes:
        tk, Kp = K, K
    else:
        nsteps = -(-(K * tn * itemsize) // max_weight_tile_bytes)
        tk = _round_up(-(-K // nsteps), 512)
        Kp = _round_up(K, tk)

    # Zero-padding: extra K columns/rows contribute 0; extra N columns are sliced off.
    xp = jnp.zeros((Bp, Kp), compute_dtype).at[:B, :K].set(x.astype(compute_dtype))
    wp = jnp.zeros((Kp, Np), compute_dtype).at[:K, :N].set(w.astype(compute_dtype))
    bp = jnp.zeros((1, Np), jnp.float32).at[0, :N].set(b.astype(jnp.float32))

    grid = (Np // tn, Kp // tk)

    # VMEM: double-buffered x/w/bias tiles + double-buffered output + fp32 accumulator.
    vmem_need = (2 * (Bp * tk + tk * tn) * itemsize
                 + 2 * tn * 4 + 2 * Bp * tn * 4 + Bp * tn * 4)
    vmem_limit = int(min(max(2 * vmem_need, 32 * 1024 * 1024), 56 * 1024 * 1024))

    out = pl.pallas_call(
        _linear_kernel,
        out_shape=jax.ShapeDtypeStruct((Bp, Np), jnp.float32),
        grid_spec=pltpu.PrefetchScalarGridSpec(
            num_scalar_prefetch=0,
            grid=grid,
            in_specs=[
                pl.BlockSpec((Bp, tk), lambda j, k: (0, k)),   # x  tile
                pl.BlockSpec((tk, tn), lambda j, k: (k, j)),   # w  tile
                pl.BlockSpec((1, tn), lambda j, k: (0, j)),    # bias (resident per j)
            ],
            out_specs=pl.BlockSpec((Bp, tn), lambda j, k: (0, j)),
            scratch_shapes=[pltpu.VMEM((Bp, tn), jnp.float32)],
        ),
        compiler_params=pltpu.CompilerParams(
            dimension_semantics=("parallel", "arbitrary"),   # N parallel, K reduction last
            vmem_limit_bytes=vmem_limit,
        ),
    )(xp, wp, bp)

    return out[:B, :N]


# ----------------------------------------------------------------------------
# Offline weight transform for the fused head
# ----------------------------------------------------------------------------
def prepare_fused_head_weights(params, d_img, h_txt, seq):
    """One-time transform of the original fc weight layout.

    Per token the PyTorch concat layout is [image(D) | text(H)].  Since the image
    features are identical for every token:
        sum_s  img @ W_img_s  ==  img @ (sum_s W_img_s)
    so the image columns of w_fc collapse to a single [D, N] block and the head
    contraction shrinks from S*(D+H) to D + S*H — the [B, S, D+H] HBM intermediate
    (broadcast + concat + flatten) disappears entirely.
    """
    D, H, S = d_img, h_txt, seq
    n = params["w_fc"].shape[1]
    w3 = params["w_fc"].reshape(S, D + H, n)
    w_img_sum = w3[:, :D, :].sum(axis=0)              # [D, N]      (fp32 sum, then cast later)
    w_text = w3[:, D:, :].reshape(S * H, n)           # [S*H, N]
    return {
        "w_img": params["w_img"],
        "b_img": params["b_img"],
        "w_head": jnp.concatenate([w_img_sum, w_text], axis=0),   # [D + S*H, N]
        "b_head": params["b_fc"],
    }


# ----------------------------------------------------------------------------
# Fusion head forward pass (matches the PyTorch forward after the backbones)
# ----------------------------------------------------------------------------
def multimodal_forward(img_backbone_feat, text_hidden, fused_params):
    """
    img_backbone_feat : [B, F_IMG]      (ResNet50 pooled features, pre `fc`)
    text_hidden       : [B, SEQ, H_TXT] (BERT last_hidden_state)
    returns           : [B, NUM_CLASSES]
    """
    B, S, H = text_hidden.shape

    # image_model.fc : Linear(F_IMG -> D_IMG)
    image_features = linear_pallas(
        img_backbone_feat, fused_params["w_img"], fused_params["b_img"]
    )                                                             # [B, D_IMG]

    # Fused head: out = img @ (sum_s W_img_s) + text_flat @ W_text + b
    text_flat = text_hidden.reshape(B, S * H)                     # [B, S*H]
    x_head = jnp.concatenate([image_features, text_flat], axis=1) # [B, D + S*H]
    out = linear_pallas(x_head, fused_params["w_head"], fused_params["b_head"])
    return out


# ----------------------------------------------------------------------------
# Deterministic parameter init (shapes mirror the module, scaled down)
# ----------------------------------------------------------------------------
def init_params(key, f_img, d_img, h_txt, seq, num_classes):
    k1, k2, k3, k4 = jax.random.split(key, 4)
    in_fc = (d_img + h_txt) * seq
    return {
        "w_img": 0.02 * jax.random.normal(k1, (f_img, d_img), jnp.float32),
        "b_img": 0.01 * jax.random.normal(k2, (d_img,), jnp.float32),
        "w_fc": 0.02 * jax.random.normal(k3, (in_fc, num_classes), jnp.float32),
        "b_fc": 0.01 * jax.random.normal(k4, (num_classes,), jnp.float32),
    }


if __name__ == "__main__":
    # Small stand-in sizes for (2048, 512, 768, 142):
    B = 2            # batch
    F_IMG = 64       # ResNet50 pooled feature dim (stand-in for 2048)
    D_IMG = 16       # image projection dim        (stand-in for 512)
    H_TXT = 32       # BERT hidden size            (stand-in for 768)
    SEQ = 8          # text sequence length        (stand-in for 142)
    NUM_CLASSES = 3

    key = jax.random.PRNGKey(0)
    k_params, k_img, k_txt = jax.random.split(key, 3)

    params = init_params(k_params, F_IMG, D_IMG, H_TXT, SEQ, NUM_CLASSES)
    fused = prepare_fused_head_weights(params, D_IMG, H_TXT, SEQ)

    # Deterministic example "backbone outputs"
    img_backbone_feat = jax.random.normal(k_img, (B, F_IMG), jnp.float32)
    text_hidden = jax.random.normal(k_txt, (B, SEQ, H_TXT), jnp.float32)

    out = multimodal_forward(img_backbone_feat, text_hidden, fused)
    out = jax.block_until_ready(out)
    assert out.shape == (B, NUM_CLASSES), out.shape

    # Reference: the ORIGINAL (un-fused) fp32 formulation with the original w_fc layout.
    ref_img = img_backbone_feat @ params["w_img"] + params["b_img"]
    ref_comb = jnp.concatenate(
        [jnp.broadcast_to(ref_img[:, None, :], (B, SEQ, D_IMG)), text_hidden], axis=2
    ).reshape(B, -1)
    ref_out = ref_comb @ params["w_fc"] + params["b_fc"]
    # bf16 compute vs fp32 reference -> loose-but-meaningful tolerance.
    assert jnp.allclose(out, ref_out, atol=3e-2, rtol=3e-2), (
        float(jnp.max(jnp.abs(out - ref_out)))
    )

    print("KERNEL_OK")
</pallas_src>

<mosaic_0001>
module attributes {stable_mosaic.version = 11 : i64} {
  func.func @_linear_kernel(%arg0: i32, %arg1: i32, %arg2: memref<8x64xbf16, #tpu.memory_space<vmem>>, %arg3: memref<64x128xbf16, #tpu.memory_space<vmem>>, %arg4: memref<1x128xf32, #tpu.memory_space<vmem>>, %arg5: memref<8x128xf32, #tpu.memory_space<vmem>>, %arg6: memref<8x128xf32, #tpu.memory_space<vmem>>) attributes {dimension_semantics = [#tpu.dimension_semantics<parallel>, #tpu.dimension_semantics<arbitrary>], iteration_bounds = array<i64: 1, 1>, scalar_prefetch = 0 : i64, scratch_operands = 1 : i64, tpu.core_type = #tpu.core_type<tc>, window_params = [{transform_indices = @transform_0, window_bounds = array<i64: 8, 64>}, {transform_indices = @transform_1, window_bounds = array<i64: 64, 128>}, {transform_indices = @transform_2, window_bounds = array<i64: 1, 128>}, {transform_indices = @transform_3, window_bounds = array<i64: 8, 128>}]} {
    %c0_i32 = arith.constant 0 : i32
    %0 = arith.cmpi eq, %arg1, %c0_i32 : i32
    %1 = arith.extui %0 : i1 to i32
    %c0_i32_0 = arith.constant 0 : i32
    %2 = arith.cmpi ne, %1, %c0_i32_0 : i32
    scf.if %2 {
      %cst_10 = arith.constant 0.000000e+00 : f32
      %12 = vector.broadcast %cst_10 : f32 to vector<8x128xf32>
      %c0_11 = arith.constant 0 : index
      %c0_12 = arith.constant 0 : index
      %13 = vector.load %arg6[%c0_11, %c0_12] : memref<8x128xf32, #tpu.memory_space<vmem>>, vector<8x128xf32>
      tpu.vector_store %arg6[%c0_11, %c0_12], %12 {strides = array<i32>} : memref<8x128xf32, #tpu.memory_space<vmem>>, vector<8x128xf32>,
    } else {
    }
    %c0 = arith.constant 0 : index
    %c0_1 = arith.constant 0 : index
    %3 = vector.load %arg6[%c0, %c0_1] : memref<8x128xf32, #tpu.memory_space<vmem>>, vector<8x128xf32>
    %c0_2 = arith.constant 0 : index
    %c0_3 = arith.constant 0 : index
    %4 = vector.load %arg2[%c0_2, %c0_3] : memref<8x64xbf16, #tpu.memory_space<vmem>>, vector<8x64xbf16>
    %c0_4 = arith.constant 0 : index
    %c0_5 = arith.constant 0 : index
    %5 = vector.load %arg3[%c0_4, %c0_5] : memref<64x128xbf16, #tpu.memory_space<vmem>>, vector<64x128xbf16>
    %cst = arith.constant dense<0.000000e+00> : vector<8x128xf32>
    %6 = tpu.matmul %4, %5, %cst {dimension_numbers = #tpu.dot_dimension_numbers<[1], [0], [0], [1], [0, 0, 1, 1], [], []>} : vector<8x64xbf16>, vector<64x128xbf16>, vector<8x128xf32> -> vector<8x128xf32>
    %7 = arith.addf %3, %6 : vector<8x128xf32>
    %c0_6 = arith.constant 0 : index
    %c0_7 = arith.constant 0 : index
    %8 = vector.load %arg6[%c0_6, %c0_7] : memref<8x128xf32, #tpu.memory_space<vmem>>, vector<8x128xf32>
    tpu.vector_store %arg6[%c0_6, %c0_7], %7 {strides = array<i32>} : memref<8x128xf32, #tpu.memory_space<vmem>>, vector<8x128xf32>,
    %c0_i32_8 = arith.constant 0 : i32
    %9 = arith.cmpi eq, %arg1, %c0_i32_8 : i32
    %10 = arith.extui %9 : i1 to i32
    %c0_i32_9 = arith.constant 0 : i32
    %11 = arith.cmpi ne, %10, %c0_i32_9 : i32
    scf.if %11 {
      %c0_10 = arith.constant 0 : index
      %c0_11 = arith.constant 0 : index
      %12 = vector.load %arg6[%c0_10, %c0_11] : memref<8x128xf32, #tpu.memory_space<vmem>>, vector<8x128xf32>
      %c0_12 = arith.constant 0 : index
      %c0_13 = arith.constant 0 : index
      %13 = vector.load %arg4[%c0_12, %c0_13] : memref<1x128xf32, #tpu.memory_space<vmem>>, vector<1x128xf32>
      %14 = vector.broadcast %13 : vector<1x128xf32> to vector<8x128xf32>
      %15 = arith.addf %12, %14 : vector<8x128xf32>
      %c0_14 = arith.constant 0 : index
      %c0_15 = arith.constant 0 : index
      %16 = vector.load %arg5[%c0_14, %c0_15] : memref<8x128xf32, #tpu.memory_space<vmem>>, vector<8x128xf32>
      tpu.vector_store %arg5[%c0_14, %c0_15], %15 {strides = array<i32>} : memref<8x128xf32, #tpu.memory_space<vmem>>, vector<8x128xf32>,
    } else {
    }
    return
  }
  func.func @transform_0(%arg0: i32, %arg1: i32) -> (i32, i32) {
    %c0_i32 = arith.constant 0 : i32
    %c0_i32_0 = arith.constant 0 : i32
    return %c0_i32, %arg1 : i32, i32
  }
  func.func @transform_1(%arg0: i32, %arg1: i32) -> (i32, i32) {
    %c0_i32 = arith.constant 0 : i32
    return %arg1, %arg0 : i32, i32
  }
  func.func @transform_2(%arg0: i32, %arg1: i32) -> (i32, i32) {
    %c0_i32 = arith.constant 0 : i32
    %c0_i32_0 = arith.constant 0 : i32
    return %c0_i32, %arg0 : i32, i32
  }
  func.func @transform_3(%arg0: i32, %arg1: i32) -> (i32, i32) {
    %c0_i32 = arith.constant 0 : i32
    %c0_i32_0 = arith.constant 0 : i32
    return %c0_i32, %arg0 : i32, i32
  }
}

</mosaic_0001>

<llo_original>
// kernel: tpu_custom_call.1
$region0: #{tpu_custom_call.1}
  #allocation0 [shape = 'u32[]', space=smem, size = 0x4, offset = 0x4, fixed_abs, tag = 'smem constant byte address 0x4 - core index']
  #allocation1 [shape = 'u32[144,128]{1,0:T(1,128)}', space=vmem, size = 0x12000, scoped, tag = 'internal scratch']
  #allocation2 [shape = 'f32[8,128]{1,0:T(8,128)}', space=vmem, size = 0x1000, scoped, tag = 'scratch operand']
  %s0 = inlined_call_operand.hbm [shape: bf16[8,64], index: 0, kind: input, shape index: {}]
  %s1 = inlined_call_operand.hbm [shape: bf16[64,128], index: 1, kind: input, shape index: {}]
  %s2 = inlined_call_operand.vmem [shape: f32[1,128], index: 2, kind: input, shape index: {}]
  %s3 = inlined_call_operand.hbm [shape: f32[8,128], index: 3, kind: output, shape index: {}]
  %s4 = sld [smem:[#allocation0]]
  $region38: #{tpu_custom_call.1} parent=0
    _
  %s6 = ssub.s32 1, %s4
  %s7 = scalar_select 0, %s6, %s4
  $region1: #{tpu_custom_call.1} parent=0
    #allocation3 [shape = 'u8[2048]{0}', space=vmem, size = 0x800, scoped, tag = 'input window, operand 0, single buffered']
    #allocation4 [shape = 's32[1]{0}', space=sflag, size = 0x4, scoped, tag = 'scoped memory for tpu_custom_call.1']
    #allocation5 [shape = 's32[1]{0}', space=sflag, size = 0x4, scoped, tag = 'scoped memory for tpu_custom_call.1']
    #allocation6 [shape = 'u8[16384]{0}', space=vmem, size = 0x4000, scoped, tag = 'input window, operand 1, single buffered']
    #allocation7 [shape = 's32[1]{0}', space=sflag, size = 0x4, scoped, tag = 'scoped memory for tpu_custom_call.1']
    #allocation8 [shape = 'u8[4096]{0}', space=vmem, size = 0x1000, scoped, tag = 'output window, operand 0, single buffered']
    %8 = vsyncpa [#allocation4], 0
    %9 = vsyncpa [#allocation7], 0
    %10 = vsyncpa [#allocation5], 0
    // Predicated region
    $region2: #{tpu_custom_call.1} parent=1 // pred_check
      _
    $region3: #{tpu_custom_call.1} parent=1 // pred_check_branch
      %12 = sbr.rel (0) target = $region5
    $region4: #{tpu_custom_call.1} parent=1 // pred_region
      %s14 = ssub.s32 64, 64
      %15 = vsyncadd [#allocation4], %s14
      %s17 = sshll.u32 [#allocation3], 4
      %s18 = int_to_ptr.vmem [resolvable:$true] %s17
      %20 = dma.hbm_to_vmem [thread:$0]  %s0, 64, %s18, [#allocation4]
    $region5: #{tpu_custom_call.1} parent=1 // pred_fallthru
      _
    // Predicated region
    $region6: #{tpu_custom_call.1} parent=1 // pred_check
      _
    $region7: #{tpu_custom_call.1} parent=1 // pred_check_branch
      %22 = sbr.rel (0) target = $region9
    $region8: #{tpu_custom_call.1} parent=1 // pred_region
      %s24 = ssub.s32 512, 512
      %25 = vsyncadd [#allocation7], %s24
      %s26 = sshll.u32 [#allocation6], 4
      %s27 = int_to_ptr.vmem [resolvable:$true] %s26
      %32 = dma.hbm_to_vmem [thread:$0]  %s1, 512, %s27, [#allocation7], 64, 64, 4
    $region9: #{tpu_custom_call.1} parent=1 // pred_fallthru
      _
    // Predicated region
    $region10: #{tpu_custom_call.1} parent=1 // pred_check
      _
    $region11: #{tpu_custom_call.1} parent=1 // pred_check_branch
      %34 = sbr.rel (0) target = $region13
    $region12: #{tpu_custom_call.1} parent=1 // pred_region
      _
    $region13: #{tpu_custom_call.1} parent=1 // pred_fallthru
      _
    // Predicated region
    $region14: #{tpu_custom_call.1} parent=1 // pred_check
      _
    $region15: #{tpu_custom_call.1} parent=1 // pred_check_branch
      %36 = sbr.rel (0) target = $region17
    $region16: #{tpu_custom_call.1} parent=1 // pred_region
      %37 = dma.done [#allocation4], 64
    $region17: #{tpu_custom_call.1} parent=1 // pred_fallthru
      _
    // Predicated region
    $region18: #{tpu_custom_call.1} parent=1 // pred_check
      _
    $region19: #{tpu_custom_call.1} parent=1 // pred_check_branch
      %39 = sbr.rel (0) target = $region21
    $region20: #{tpu_custom_call.1} parent=1 // pred_region
      %40 = dma.done [#allocation7], 512
    $region21: #{tpu_custom_call.1} parent=1 // pred_fallthru
      _
    %p42 = scmp.eq.s32.totalorder 0, 0
    // Predicated region
    $region22: #{tpu_custom_call.1} parent=1 // pred_check
      %p43 = pneg %p42
    $region23: #{tpu_custom_call.1} parent=1 // pred_check_branch
      %45 = sbr.rel (%p43) target = $region25
    $region24: #{tpu_custom_call.1} parent=1 // pred_region
      %46 = vst [vmem:[#allocation2] sm:$0xff] 0.0
    $region25: #{tpu_custom_call.1} parent=1 // pred_fallthru
      _
    %v47 = vld [vmem:[#allocation2] sm:$0xff]
    %v48 = vld [vmem:[#allocation3] sm:$0xf]
    %v49 = vld [vmem:[#allocation6] sm:$0xf]
    %v50 = vld [vmem:[#allocation6 + $0x4] sm:$0xf]
    %v51 = vld [vmem:[#allocation6 + $0x8] sm:$0xf]
    %v52 = vld [vmem:[#allocation6 + $0xc] sm:$0xf]
    %v53 = vld [vmem:[#allocation6 + $0x10] sm:$0xf]
    %v54 = vld [vmem:[#allocation6 + $0x14] sm:$0xf]
    %v55 = vld [vmem:[#allocation6 + $0x18] sm:$0xf]
    %v56 = vld [vmem:[#allocation6 + $0x1c] sm:$0xf]
    %v65 = vunpack.c.l.b16 %v49
    %v66 = vunpack.c.l.b16 %v50
    %v67 = vunpack.c.l.b16 %v51
    %v68 = vunpack.c.l.b16 %v52
    %v69 = vunpack.c.l.b16 %v53
    %v70 = vunpack.c.l.b16 %v54
    %v71 = vunpack.c.l.b16 %v55
    %v72 = vunpack.c.l.b16 %v56
    %v73 = vpack.c.b16 %v66, %v65
    %v74 = vpack.c.b16 %v68, %v67
    %v75 = vpack.c.b16 %v70, %v69
    %v76 = vpack.c.b16 %v72, %v71
    %vm81 = vcmask 523264
    %v83 = vsel %vm81, %v48, 0
    %85 = vmatprep.subr.bf16.mxu0 0
    %86 = vmatpush1.bf16.msra.mxu0 %v73
    %87 = vmatprep.subr.bf16.mxu0 0
    %88 = vmatpush1.bf16.msra.mxu0 %v74
    %89 = vmatprep.subr.bf16.mxu0 0
    %90 = vmatpush1.bf16.msra.mxu0 %v75
    %91 = vmatprep.subr.bf16.mxu0 0
    %92 = vmatpush1.bf16.msra.mxu0 %v76
    %93 = vmatprep.subr.bf16.mxu0 0
    %94 = vmatpush1.bf16.msra.mxu0 0
    %95 = vmatprep.subr.bf16.mxu0 0
    %96 = vmatpush1.bf16.msra.mxu0 0
    %97 = vmatprep.subr.bf16.mxu0 0
    %98 = vmatpush1.bf16.msra.mxu0 0
    %99 = vmatprep.subr.bf16.mxu0 0
    %100 = vmatpush1.bf16.msra.mxu0 0
    %101 = vmatprep.subr.bf16.mxu0 0
    %102 = vmatpush1.bf16.msra.mxu0 0
    %103 = vmatprep.subr.bf16.mxu0 0
    %104 = vmatpush1.bf16.msra.mxu0 0
    %105 = vmatprep.subr.bf16.mxu0 0
    %106 = vmatpush1.bf16.msra.mxu0 0
    %107 = vmatprep.subr.bf16.mxu0 0
    %108 = vmatpush1.bf16.msra.mxu0 0
    %109 = vmatprep.subr.bf16.mxu0 0
    %110 = vmatpush1.bf16.msra.mxu0 0
    %111 = vmatprep.subr.bf16.mxu0 0
    %112 = vmatpush1.bf16.msra.mxu0 0
    %113 = vmatprep.subr.bf16.mxu0 0
    %114 = vmatpush1.bf16.msra.mxu0 0
    %115 = vmatprep.subr.bf16.mxu0 0
    %116 = vmatpush1.bf16.msra.mxu0 0
    %117 = vmatprep.mubr.bf16.mxu0 0
    %118 = vmatmul.mubr.bf16.gmra.mrb[0].mxu0 %v83
    %v119 = vpop.f32.mrb[0].mxu0
    %v120 = vadd.f32 0.0, %v119
    %v121 = vpop.f32.mrb[0].mxu0
    %v122 = vpop.f32.mrb[0].mxu0
    %v123 = vpop.f32.mrb[0].mxu0
    %124 = vdwg.mxu0
    %v125 = vadd.f32 %v47, %v120
    %126 = vst [vmem:[#allocation2] sm:$0xff] %v125
    // Predicated region
    $region26: #{tpu_custom_call.1} parent=1 // pred_check
      %p127 = pneg %p42
    $region27: #{tpu_custom_call.1} parent=1 // pred_check_branch
      %129 = sbr.rel (%p127) target = $region29
    $region28: #{tpu_custom_call.1} parent=1 // pred_region
      %v130 = vld [vmem:[#allocation2] sm:$0xff]
      %v131 = vld [vmem:[%s2] sm:$0x1]
      %v133 = vlaneseq
      %v134 = vshrl.u32 %v133, 7
      %v135 = vsub.s32 0, %v134
      %v136 = vrot.slane %v131, %v135
      %v138 = vadd.f32 %v130, %v136
      %139 = vst [vmem:[#allocation8] sm:$0xff] %v138
    $region29: #{tpu_custom_call.1} parent=1 // pred_fallthru
      _
    // Predicated region
    $region30: #{tpu_custom_call.1} parent=1 // pred_check
      _
    $region31: #{tpu_custom_call.1} parent=1 // pred_check_branch
      %141 = sbr.rel (0) target = $region33
    $region32: #{tpu_custom_call.1} parent=1 // pred_region
      %s143 = ssub.s32 128, 128
      %144 = vsyncadd [#allocation5], %s143
      %s146 = sshll.u32 [#allocation8], 4
      %s147 = int_to_ptr.vmem [resolvable:$true] %s146
      %149 = dma.vmem_to_hbm [thread:$0]  %s147, 128, %s3, [#allocation5]
    $region33: #{tpu_custom_call.1} parent=1 // pred_fallthru
      _
    // Predicated region
    $region34: #{tpu_custom_call.1} parent=1 // pred_check
      _
    $region35: #{tpu_custom_call.1} parent=1 // pred_check_branch
      %151 = sbr.rel (0) target = $region37
    $region36: #{tpu_custom_call.1} parent=1 // pred_region
      %152 = dma.done [#allocation5], 128
    $region37: #{tpu_custom_call.1} parent=1 // pred_fallthru
      _
    %153 = vsyncpa [#allocation4], 1
    %154 = vsyncpa [#allocation7], 1
    %155 = vsyncpa [#allocation5], 1

</llo_original>
